<compile_context>
chip_gen: v7x
topology: tpu7x:2x2x1
jax: 0.10.0
libtpu: 0.0.40
codegen_flags: <defaults>
</compile_context>

<pallas_src>
import functools
import math

import jax
import jax.numpy as jnp
import numpy as np
from jax.experimental import pallas as pl
from jax.experimental.pallas import tpu as pltpu


def _label_smoothing_kernel(x_ref, tgt_ref, out_ref, *, n_rows, tile_n,
                            padding_idx, confidence, smooth_val, c_ent):
    """One row-tile: per-row smoothed-KL partial losses (closed form)."""
    i = pl.program_id(0)

    x = x_ref[...].astype(jnp.float32)      # (TN, V) log-probs (upcast in-kernel)
    tgt = tgt_ref[...]                      # (TN, 1) int32 labels
    tn, v = x.shape

    cols = jax.lax.broadcasted_iota(jnp.int32, (tn, v), 1)

    row_sum = jnp.sum(x, axis=-1, keepdims=True)                          # (TN, 1)
    x_t = jnp.sum(jnp.where(cols == tgt, x, 0.0), axis=-1, keepdims=True)  # x[r, tgt]
    x_pad = x[:, padding_idx:padding_idx + 1]                              # x[r, pad]

    per_row = (c_ent
               - confidence * x_t
               - smooth_val * (row_sum - x_t - x_pad))

    # Rows whose target is the padding index contribute 0 (index_fill_ semantics).
    per_row = jnp.where(tgt == padding_idx, 0.0, per_row)
    # Rows past the true N (partial trailing tile) contribute 0.
    rows = i * tile_n + jax.lax.broadcasted_iota(jnp.int32, (tn, 1), 0)
    per_row = jnp.where(rows < n_rows, per_row, 0.0)

    out_ref[...] = per_row


def _round_up8(x):
    return ((x + 7) // 8) * 8


def label_smoothing_loss(x, target, *, size, padding_idx, smoothing,
                         tile_n=None, vmem_limit_bytes=48 << 20):
    """Pallas equivalent of LabelSmoothing.forward(x, target).

    x:      (N, V) log-probabilities (V == size), any float dtype (f32/bf16)
    target: (N,)   int labels
    returns scalar float32 loss (KLDivLoss reduction='sum').
    """
    n, v = x.shape
    assert v == size
    assert size > 2, "label smoothing needs size > 2 (smoothing / (size - 2))"

    confidence = 1.0 - smoothing
    smooth_val = smoothing / (size - 2)
    c_ent = 0.0
    if confidence > 0.0:
        c_ent += confidence * math.log(confidence)
    if smooth_val > 0.0:
        c_ent += (size - 2) * smooth_val * math.log(smooth_val)

    if tile_n is None:
        # Double-buffered x tiles should stay well inside the scoped VMEM
        # budget (budget itself is chosen to be safe on v7x's 64 MiB VMEM).
        itemsize = x.dtype.itemsize
        per_buffer_budget = int(0.25 * vmem_limit_bytes)   # 2 buffers ~= half limit
        tile_n = per_buffer_budget // (v * itemsize)
        tile_n = min(tile_n, 1024, _round_up8(n))
        tile_n = max(8, (tile_n // 8) * 8)
    else:
        assert tile_n >= 8 and tile_n % 8 == 0

    num_tiles = pl.cdiv(n, tile_n)
    target2d = target.reshape(n, 1).astype(jnp.int32)

    kernel = functools.partial(
        _label_smoothing_kernel,
        n_rows=n,
        tile_n=tile_n,
        padding_idx=padding_idx,
        confidence=float(confidence),
        smooth_val=float(smooth_val),
        c_ent=float(c_ent),
    )

    per_row = pl.pallas_call(
        kernel,
        out_shape=jax.ShapeDtypeStruct((n, 1), jnp.float32),
        grid_spec=pltpu.PrefetchScalarGridSpec(
            num_scalar_prefetch=0,
            grid=(num_tiles,),
            in_specs=[
                pl.BlockSpec((tile_n, v), lambda i: (i, 0)),   # x tile (native dtype)
                pl.BlockSpec((tile_n, 1), lambda i: (i, 0)),   # target tile
            ],
            out_specs=pl.BlockSpec((tile_n, 1), lambda i: (i, 0)),
        ),
        compiler_params=pltpu.CompilerParams(
            dimension_semantics=("parallel",),        # independent row tiles
            vmem_limit_bytes=vmem_limit_bytes),
    )(x, target2d)

    return jnp.sum(per_row)


def _reference_loss(x, target, *, size, padding_idx, smoothing):
    """Pure-JAX reference mirroring the PyTorch module (elementwise KL)."""
    n, v = x.shape
    confidence = 1.0 - smoothing
    true_dist = jnp.full((n, v), smoothing / (size - 2), dtype=jnp.float32)
    true_dist = true_dist.at[jnp.arange(n), target].set(confidence)
    true_dist = true_dist.at[:, padding_idx].set(0.0)
    true_dist = jnp.where((target == padding_idx)[:, None], 0.0, true_dist)
    safe_log = jnp.log(jnp.where(true_dist > 0.0, true_dist, 1.0))
    kl = jnp.where(true_dist > 0.0, true_dist * (safe_log - x.astype(jnp.float32)), 0.0)
    return jnp.sum(kl)


if __name__ == "__main__":
    SIZE = 32          # vocab size (== x.shape[1])
    PADDING_IDX = 0
    SMOOTHING = 0.1

    def make_case(k, n):
        k_logits, k_tgt = jax.random.split(k)
        logits = jax.random.normal(k_logits, (n, SIZE), dtype=jnp.float32)
        xs = jax.nn.log_softmax(logits, axis=-1)      # module expects log-probs
        tgt = jax.random.randint(k_tgt, (n,), 0, SIZE, dtype=jnp.int32)
        # force a couple of padding targets to exercise the row-masking path
        tgt = tgt.at[3].set(PADDING_IDX).at[n - 2].set(PADDING_IDX)
        return xs, tgt

    # (N, tile_n): single tile / multi-tile grid / partial trailing tile (cdiv).
    cases = [(16, None), (24, 8), (20, 8)]
    keys = jax.random.split(jax.random.PRNGKey(0), len(cases))
    for (N, TN), k in zip(cases, keys):
        x, target = make_case(k, N)
        loss = label_smoothing_loss(
            x, target, size=SIZE, padding_idx=PADDING_IDX,
            smoothing=SMOOTHING, tile_n=TN)
        loss = jax.block_until_ready(loss)
        ref = _reference_loss(
            x, target, size=SIZE, padding_idx=PADDING_IDX, smoothing=SMOOTHING)
        ref = jax.block_until_ready(ref)
        assert np.allclose(np.asarray(loss), np.asarray(ref),
                           rtol=1e-5, atol=1e-4), (N, TN, loss, ref)

    print("KERNEL_OK")
</pallas_src>

<mosaic_0001>
module attributes {stable_mosaic.version = 11 : i64} {
  func.func @_label_smoothing_kernel(%arg0: i32, %arg1: memref<16x32xf32, #tpu.memory_space<vmem>>, %arg2: memref<16x1xi32, #tpu.memory_space<vmem>>, %arg3: memref<16x1xf32, #tpu.memory_space<vmem>>) attributes {dimension_semantics = [#tpu.dimension_semantics<parallel>], iteration_bounds = array<i64: 1>, scalar_prefetch = 0 : i64, scratch_operands = 0 : i64, tpu.core_type = #tpu.core_type<tc>, window_params = [{transform_indices = @transform_0, window_bounds = array<i64: 16, 32>}, {transform_indices = @transform_1, window_bounds = array<i64: 16, 1>}, {transform_indices = @transform_2, window_bounds = array<i64: 16, 1>}]} {
    %c0 = arith.constant 0 : index
    %c0_0 = arith.constant 0 : index
    %0 = vector.load %arg1[%c0, %c0_0] : memref<16x32xf32, #tpu.memory_space<vmem>>, vector<16x32xf32>
    %c0_1 = arith.constant 0 : index
    %c0_2 = arith.constant 0 : index
    %1 = vector.load %arg2[%c0_1, %c0_2] : memref<16x1xi32, #tpu.memory_space<vmem>>, vector<16x1xi32>
    %2 = tpu.iota {dimensions = array<i32: 1>} : vector<16x32xi32>
    %cst = arith.constant dense<0.000000e+00> : vector<16xf32>
    %3 = vector.multi_reduction <add>, %0, %cst [1] : vector<16x32xf32> to vector<16xf32>
    %4 = vector.shape_cast %3 : vector<16xf32> to vector<16x1xf32>
    %5 = vector.broadcast %1 : vector<16x1xi32> to vector<16x32xi32>
    %6 = arith.cmpi eq, %2, %5 : vector<16x32xi32>
    %cst_3 = arith.constant 0.000000e+00 : f32
    %7 = vector.broadcast %cst_3 : f32 to vector<16x32xf32>
    %8 = arith.select %6, %0, %7 : vector<16x32xi1>, vector<16x32xf32>
    %cst_4 = arith.constant dense<0.000000e+00> : vector<16xf32>
    %9 = vector.multi_reduction <add>, %8, %cst_4 [1] : vector<16x32xf32> to vector<16xf32>
    %10 = vector.shape_cast %9 : vector<16xf32> to vector<16x1xf32>
    %11 = vector.extract_strided_slice %0 {offsets = [0, 0], sizes = [16, 1], strides = [1, 1]} : vector<16x32xf32> to vector<16x1xf32>
    %cst_5 = arith.constant 0.899999976 : f32
    %12 = vector.broadcast %cst_5 : f32 to vector<16x1xf32>
    %13 = arith.mulf %12, %10 : vector<16x1xf32>
    %cst_6 = arith.constant -0.665202737 : f32
    %14 = vector.broadcast %cst_6 : f32 to vector<16x1xf32>
    %15 = arith.subf %14, %13 : vector<16x1xf32>
    %16 = arith.subf %4, %10 : vector<16x1xf32>
    %17 = arith.subf %16, %11 : vector<16x1xf32>
    %cst_7 = arith.constant 0.00333333341 : f32
    %18 = vector.broadcast %cst_7 : f32 to vector<16x1xf32>
    %19 = arith.mulf %18, %17 : vector<16x1xf32>
    %20 = arith.subf %15, %19 : vector<16x1xf32>
    %c0_i32 = arith.constant 0 : i32
    %21 = vector.broadcast %c0_i32 : i32 to vector<16x1xi32>
    %22 = arith.cmpi eq, %1, %21 : vector<16x1xi32>
    %cst_8 = arith.constant 0.000000e+00 : f32
    %23 = vector.broadcast %cst_8 : f32 to vector<16x1xf32>
    %24 = arith.select %22, %23, %20 : vector<16x1xi1>, vector<16x1xf32>
    %c16_i32 = arith.constant 16 : i32
    %25 = arith.muli %arg0, %c16_i32 : i32
    %26 = tpu.iota {dimensions = array<i32: 0>} : vector<16x1xi32>
    %27 = vector.broadcast %25 : i32 to vector<16x1xi32>
    %28 = arith.addi %27, %26 : vector<16x1xi32>
    %c16_i32_9 = arith.constant 16 : i32
    %29 = vector.broadcast %c16_i32_9 : i32 to vector<16x1xi32>
    %30 = arith.cmpi slt, %28, %29 : vector<16x1xi32>
    %cst_10 = arith.constant 0.000000e+00 : f32
    %31 = vector.broadcast %cst_10 : f32 to vector<16x1xf32>
    %32 = arith.select %30, %24, %31 : vector<16x1xi1>, vector<16x1xf32>
    %c0_11 = arith.constant 0 : index
    %c0_12 = arith.constant 0 : index
    %33 = vector.load %arg3[%c0_11, %c0_12] : memref<16x1xf32, #tpu.memory_space<vmem>>, vector<16x1xf32>
    tpu.vector_store %arg3[%c0_11, %c0_12], %32 {strides = array<i32>} : memref<16x1xf32, #tpu.memory_space<vmem>>, vector<16x1xf32>,
    return
  }
  func.func @transform_0(%arg0: i32) -> (i32, i32) {
    %c0_i32 = arith.constant 0 : i32
    %c0_i32_0 = arith.constant 0 : i32
    return %arg0, %c0_i32 : i32, i32
  }
  func.func @transform_1(%arg0: i32) -> (i32, i32) {
    %c0_i32 = arith.constant 0 : i32
    %c0_i32_0 = arith.constant 0 : i32
    return %arg0, %c0_i32 : i32, i32
  }
  func.func @transform_2(%arg0: i32) -> (i32, i32) {
    %c0_i32 = arith.constant 0 : i32
    %c0_i32_0 = arith.constant 0 : i32
    return %arg0, %c0_i32 : i32, i32
  }
}

</mosaic_0001>

<llo_original>
// kernel: tpu_custom_call.1
$region0: #{tpu_custom_call.1}
  #allocation0 [shape = 'u32[]', space=smem, size = 0x4, offset = 0x4, fixed_abs, tag = 'smem constant byte address 0x4 - core index']
  #allocation1 [shape = 'u32[144,128]{1,0:T(1,128)}', space=vmem, size = 0x12000, scoped, tag = 'internal scratch']
  %s0 = inlined_call_operand.vmem [shape: f32[16,32], index: 0, kind: input, shape index: {}]
  %s1 = inlined_call_operand.vmem [shape: s32[16,1], index: 1, kind: input, shape index: {}]
  %s2 = inlined_call_operand.vmem [shape: f32[16,1], index: 2, kind: output, shape index: {}]
  %s3 = sld [smem:[#allocation0]]
  $region18: #{tpu_custom_call.1} parent=0
    _
  %s5 = ssub.s32 1, %s3
  %s6 = scalar_select 0, %s5, %s3
  // Predicated region
  $region2: #{tpu_custom_call.1} parent=0 // pred_check
    _
  $region3: #{tpu_custom_call.1} parent=0 // pred_check_branch
    %8 = sbr.rel (0) target = $region5
  $region4: #{tpu_custom_call.1} parent=0 // pred_region
    _
  $region5: #{tpu_custom_call.1} parent=0 // pred_fallthru
    _
  // Predicated region
  $region6: #{tpu_custom_call.1} parent=0 // pred_check
    _
  $region7: #{tpu_custom_call.1} parent=0 // pred_check_branch
    %10 = sbr.rel (0) target = $region9
  $region8: #{tpu_custom_call.1} parent=0 // pred_region
    _
  $region9: #{tpu_custom_call.1} parent=0 // pred_fallthru
    _
  %v11 = vld [vmem:[%s0] sm:$0xff]
  %v12 = vld [vmem:[%s0 + $0x8] sm:$0xff]
  %v13 = vld [vmem:[%s1] sm:$0xff]
  %v14 = vld [vmem:[%s1 + $0x8] sm:$0xff]
  %v15 = vlaneseq
  %v16 = vand.u32 %v15, 127
  %vm17 = vcmask 261120
  %v18 = vsel %vm17, %v11, 0.0
  %19 = vadd.xlane.f32.xlu0 %v18
  %v20 = vpop.xlane.xlu0 %19
  %v21 = vsel %vm17, %v12, 0.0
  %22 = vadd.xlane.f32.xlu0 %v21
  %v23 = vpop.xlane.xlu0 %22
  %24 = vset.pattern.permute.xlu0 0
  %25 = vperm.xlu0 %24, %v13
  %v26 = vpop.permute.xlu0 %25
  %27 = vset.pattern.permute.xlu0 0
  %28 = vperm.xlu0 %27, %v14
  %v29 = vpop.permute.xlu0 %28
  %vm30 = vcmp.eq.s32.totalorder %v16, %v26
  %vm31 = vcmp.eq.s32.totalorder %v16, %v29
  %v32 = vsel %vm30, %v11, 0.0
  %v33 = vsel %vm31, %v12, 0.0
  %v34 = vsel %vm17, %v32, 0.0
  %35 = vadd.xlane.f32.xlu0 %v34
  %v36 = vpop.xlane.xlu0 %35
  %v37 = vsel %vm17, %v33, 0.0
  %38 = vadd.xlane.f32.xlu0 %v37
  %v39 = vpop.xlane.xlu0 %38
  %v40 = vmul.f32 %v36, 0.9
  %v41 = vmul.f32 %v39, 0.9
  %v42 = vsub.f32 -0.66520274, %v40
  %v43 = vsub.f32 -0.66520274, %v41
  %v44 = vsub.f32 %v20, %v36
  %v45 = vsub.f32 %v23, %v39
  %v46 = vsub.f32 %v44, %v11
  %v47 = vsub.f32 %v45, %v12
  %v48 = vmul.f32 %v46, 0.0033333334
  %v49 = vmul.f32 %v47, 0.0033333334
  %v50 = vsub.f32 %v42, %v48
  %v51 = vsub.f32 %v43, %v49
  %vm52 = vcmp.eq.s32.totalorder %v13, 0
  %vm53 = vcmp.eq.s32.totalorder %v14, 0
  %v54 = vsel %vm52, 0.0, %v50
  %v55 = vsel %vm53, 0.0, %v51
  %s56 = smul.u32 0, 16
  %v57 = vlaneseq
  %v58 = vshrl.u32 %v57, 7
  %v59 = vadd.s32 %v58, 8
  %v60 = vstv %s56
  %v61 = vadd.s32 %v60, %v58
  %v62 = vadd.s32 %v60, %v59
  %vm63 = vcmp.lt.s32.totalorder %v61, 16
  %vm64 = vcmp.lt.s32.totalorder %v62, 16
  %v65 = vsel %vm63, %v54, 0.0
  %v66 = vsel %vm64, %v55, 0.0
  %vm67 = vcmask 7168
  %68 = vst.msk [vmem:[%s2] sm:$0xff] %vm67, %v65
  %69 = vst.msk [vmem:[%s2 + $0x8] sm:$0xff] %vm67, %v66
  // Predicated region
  $region10: #{tpu_custom_call.1} parent=0 // pred_check
    _
  $region11: #{tpu_custom_call.1} parent=0 // pred_check_branch
    %71 = sbr.rel (0) target = $region13
  $region12: #{tpu_custom_call.1} parent=0 // pred_region
    _
  $region13: #{tpu_custom_call.1} parent=0 // pred_fallthru
    _
  // Predicated region
  $region14: #{tpu_custom_call.1} parent=0 // pred_check
    _
  $region15: #{tpu_custom_call.1} parent=0 // pred_check_branch
    %73 = sbr.rel (0) target = $region17
  $region16: #{tpu_custom_call.1} parent=0 // pred_region
    _
  $region17: #{tpu_custom_call.1} parent=0 // pred_fallthru
    _

</llo_original>
